<compile_context>
chip_gen: v5e
topology: v5e:2x2
jax: 0.10.0
libtpu: 0.0.40
codegen_flags: <defaults>
</compile_context>

<pallas_src>
import functools

import jax
import jax.numpy as jnp
from jax.experimental import pallas as pl
from jax.experimental.pallas import tpu as pltpu

_LANE = 128      # vreg lane width
_SUBLANE = 8     # f32 sublane width


def _round_up(n, m):
    return ((n + m - 1) // m) * m


def _vmem_limit_bytes():
    """Generation-aware scoped-VMEM limit (v7x: 64 MiB/TC, v5e/v6e: 128 MiB)."""
    try:
        cap = pltpu.get_tpu_info().vmem_capacity_bytes
    except Exception:
        cap = 64 * 1024 * 1024   # conservative default (v7x per-TC VMEM)
    return min(int(cap * 0.75), 96 * 1024 * 1024)


# ------------------------------ single-pass path ------------------------------

def _minmax_kernel(x_ref, o_ref):
    # x has logical shape (tm, HW); the compiler masks the ragged lane tail of the
    # reductions automatically, so no manual masking is needed.
    x = x_ref[...]
    mins = jnp.min(x, axis=-1, keepdims=True)
    maxs = jnp.max(x, axis=-1, keepdims=True)
    inv = 1.0 / (maxs - mins)                      # per-row reciprocal, (tm, 1)
    o_ref[...] = ((x - mins) * inv).astype(o_ref.dtype)


def _single_pass(x2, *, target_block_bytes, vmem_limit):
    bc, hw = x2.shape
    itemsize = jnp.dtype(x2.dtype).itemsize
    bytes_per_row = _round_up(hw, _LANE) * itemsize      # VMEM footprint per row

    # Row tile: ~target_block_bytes per block, capped so the 4 live blocks
    # (double-buffered in + out) fit the VMEM budget; multiple of 8.
    budget = int(vmem_limit * 0.8)
    tm = min(budget // (4 * bytes_per_row),
             max(1, target_block_bytes // bytes_per_row))
    tm = max(_SUBLANE, (tm // _SUBLANE) * _SUBLANE)
    if bc >= 4 * _SUBLANE:
        # Keep >= 4 grid steps so v7x's two TensorCores both get work and DMA overlaps.
        tm = min(tm, max(_SUBLANE, (bc // (4 * _SUBLANE)) * _SUBLANE))
    if tm >= bc:
        tm = bc   # single full-dim block: no divisibility constraint, no padding

    return pl.pallas_call(
        _minmax_kernel,
        out_shape=jax.ShapeDtypeStruct((bc, hw), x2.dtype),
        grid_spec=pltpu.PrefetchScalarGridSpec(
            num_scalar_prefetch=0,
            grid=(pl.cdiv(bc, tm),),
            in_specs=[pl.BlockSpec((tm, hw), lambda i: (i, 0))],
            out_specs=pl.BlockSpec((tm, hw), lambda i: (i, 0)),
        ),
        compiler_params=pltpu.CompilerParams(
            dimension_semantics=("parallel",),
            vmem_limit_bytes=vmem_limit),
    )(x2)


# ---------------------------- two-pass fallback path ---------------------------

def _reduce_kernel(x_ref, mn_ref, scale_ref, *, hw, thw):
    k = pl.program_id(1)

    @pl.when(k == 0)
    def _():
        mn_ref[...] = jnp.full_like(mn_ref, jnp.inf)
        scale_ref[...] = jnp.full_like(scale_ref, -jnp.inf)   # holds running max

    x = x_ref[...]                                            # (tm, thw)
    if hw % thw:
        # Mask the ragged lane tail of the last spatial block (padding is undefined).
        lane = jax.lax.broadcasted_iota(jnp.int32, x.shape, 1) + k * thw
        valid = lane < hw
        x_min = jnp.where(valid, x, jnp.inf)
        x_max = jnp.where(valid, x, -jnp.inf)
    else:
        x_min = x
        x_max = x
    mn_ref[...] = jnp.minimum(mn_ref[...], jnp.min(x_min, axis=-1, keepdims=True))
    scale_ref[...] = jnp.maximum(scale_ref[...], jnp.max(x_max, axis=-1, keepdims=True))

    @pl.when(k == pl.num_programs(1) - 1)
    def _():
        # Finalize: turn the running max into the per-row scale so pass 2 is a pure FMA.
        scale_ref[...] = 1.0 / (scale_ref[...] - mn_ref[...])


def _normalize_kernel(x_ref, mn_ref, scale_ref, o_ref):
    o_ref[...] = ((x_ref[...] - mn_ref[...]) * scale_ref[...]).astype(o_ref.dtype)


def _two_pass(x2, *, target_block_bytes, vmem_limit):
    bc, hw = x2.shape
    itemsize = jnp.dtype(x2.dtype).itemsize

    tm = min(bc, _SUBLANE)
    budget = int(vmem_limit * 0.8)
    thw = min(budget // (4 * tm * itemsize),
              max(_LANE, target_block_bytes // (tm * itemsize)))
    thw = max(_LANE, (thw // _LANE) * _LANE)
    thw = min(thw, _round_up(hw, _LANE))

    grid = (pl.cdiv(bc, tm), pl.cdiv(hw, thw))

    # Pass 1: per-row min and 1/(max-min), accumulated in resident output blocks.
    mins, scale = pl.pallas_call(
        functools.partial(_reduce_kernel, hw=hw, thw=thw),
        out_shape=(jax.ShapeDtypeStruct((bc, 1), jnp.float32),
                   jax.ShapeDtypeStruct((bc, 1), jnp.float32)),
        grid_spec=pltpu.PrefetchScalarGridSpec(
            num_scalar_prefetch=0,
            grid=grid,
            in_specs=[pl.BlockSpec((tm, thw), lambda i, k: (i, k))],
            out_specs=[pl.BlockSpec((tm, 1), lambda i, k: (i, 0)),
                       pl.BlockSpec((tm, 1), lambda i, k: (i, 0))],
        ),
        compiler_params=pltpu.CompilerParams(
            dimension_semantics=("parallel", "arbitrary"),
            vmem_limit_bytes=vmem_limit),
    )(x2)

    # Pass 2: normalize.
    return pl.pallas_call(
        _normalize_kernel,
        out_shape=jax.ShapeDtypeStruct((bc, hw), x2.dtype),
        grid_spec=pltpu.PrefetchScalarGridSpec(
            num_scalar_prefetch=0,
            grid=grid,
            in_specs=[pl.BlockSpec((tm, thw), lambda i, k: (i, k)),
                      pl.BlockSpec((tm, 1), lambda i, k: (i, 0)),
                      pl.BlockSpec((tm, 1), lambda i, k: (i, 0))],
            out_specs=pl.BlockSpec((tm, thw), lambda i, k: (i, k)),
        ),
        compiler_params=pltpu.CompilerParams(
            dimension_semantics=("parallel", "parallel"),
            vmem_limit_bytes=vmem_limit),
    )(x2, mins, scale)


# ------------------------------------- API -------------------------------------

def minmax_layer(x, *, target_block_bytes=2 * 1024 * 1024, force_two_pass=False):
    """x: (B, C, H, W) float -> per-(B, C) min-max normalized, same shape."""
    B, C, H, W = x.shape
    bc, hw = B * C, H * W
    x2 = x.reshape(bc, hw)                                    # free (contiguous) reshape
    itemsize = jnp.dtype(x.dtype).itemsize

    vmem_limit = _vmem_limit_bytes()
    budget = int(vmem_limit * 0.8)
    bytes_per_row = _round_up(hw, _LANE) * itemsize
    single_pass_ok = 4 * min(bc, _SUBLANE) * bytes_per_row <= budget

    if force_two_pass or not single_pass_ok:
        out2 = _two_pass(x2, target_block_bytes=target_block_bytes,
                         vmem_limit=vmem_limit)
    else:
        out2 = _single_pass(x2, target_block_bytes=target_block_bytes,
                            vmem_limit=vmem_limit)
    return out2.reshape(B, C, H, W)                           # free reshape back


def _reference(x):
    flat = x.reshape(x.shape[0], x.shape[1], -1)
    mins = flat.min(-1)[:, :, None, None]
    maxs = flat.max(-1)[:, :, None, None]
    return (x - mins) / (maxs - mins)


if __name__ == "__main__":
    key = jax.random.PRNGKey(0)
    k1, k2, k3, k4 = jax.random.split(key, 4)

    # 1) Single-pass path, lane-aligned HW (16*16 = 256), full-dim row block.
    x1 = jax.random.normal(k1, (2, 4, 16, 16), dtype=jnp.float32)
    y1 = jax.block_until_ready(minmax_layer(x1))
    assert y1.shape == x1.shape
    assert jnp.allclose(y1, _reference(x1), atol=1e-6, rtol=1e-6), "single-pass mismatch"

    # 2) Single-pass, ragged lane width (7*7 = 49) and BC < 8 (full-dim row block).
    x2 = jax.random.normal(k2, (2, 3, 7, 7), dtype=jnp.float32)
    y2 = jax.block_until_ready(minmax_layer(x2))
    assert jnp.allclose(y2, _reference(x2), atol=1e-6, rtol=1e-6), "ragged single-pass mismatch"

    # 3) Single-pass with a partial row block (BC=18, tm=8 -> 3 grid steps).
    x3 = jax.random.normal(k3, (2, 9, 16, 16), dtype=jnp.float32)
    y3 = jax.block_until_ready(minmax_layer(x3, target_block_bytes=8192))
    assert jnp.allclose(y3, _reference(x3), atol=1e-6, rtol=1e-6), "partial-row mismatch"

    # 4) Two-pass fallback (forced) with accumulation across spatial tiles.
    y4 = jax.block_until_ready(
        minmax_layer(x1, force_two_pass=True, target_block_bytes=4096))
    assert jnp.allclose(y4, _reference(x1), atol=1e-6, rtol=1e-6), "two-pass mismatch"

    # 5) Two-pass fallback with a ragged (masked) last spatial tile.
    x5 = jax.random.normal(k4, (2, 2, 10, 20), dtype=jnp.float32)   # HW=200, thw=128
    y5 = jax.block_until_ready(
        minmax_layer(x5, force_two_pass=True, target_block_bytes=2048))
    assert jnp.allclose(y5, _reference(x5), atol=1e-6, rtol=1e-6), "masked two-pass mismatch"

    print("KERNEL_OK")
</pallas_src>

<mosaic_0001>
module attributes {stable_mosaic.version = 11 : i64} {
  func.func @_minmax_kernel(%arg0: i32, %arg1: memref<8x256xf32, #tpu.memory_space<vmem>>, %arg2: memref<8x256xf32, #tpu.memory_space<vmem>>) attributes {dimension_semantics = [#tpu.dimension_semantics<parallel>], iteration_bounds = array<i64: 1>, scalar_prefetch = 0 : i64, scratch_operands = 0 : i64, tpu.core_type = #tpu.core_type<tc>, window_params = [{transform_indices = @transform_0, window_bounds = array<i64: 8, 256>}, {transform_indices = @transform_1, window_bounds = array<i64: 8, 256>}]} {
    %c0 = arith.constant 0 : index
    %c0_0 = arith.constant 0 : index
    %0 = vector.load %arg1[%c0, %c0_0] : memref<8x256xf32, #tpu.memory_space<vmem>>, vector<8x256xf32>
    %cst = arith.constant dense<0x7F800000> : vector<8xf32>
    %1 = vector.multi_reduction <minimumf>, %0, %cst [1] : vector<8x256xf32> to vector<8xf32>
    %2 = vector.shape_cast %1 : vector<8xf32> to vector<8x1xf32>
    %cst_1 = arith.constant dense<0xFF800000> : vector<8xf32>
    %3 = vector.multi_reduction <maximumf>, %0, %cst_1 [1] : vector<8x256xf32> to vector<8xf32>
    %4 = vector.shape_cast %3 : vector<8xf32> to vector<8x1xf32>
    %5 = arith.subf %4, %2 : vector<8x1xf32>
    %cst_2 = arith.constant 1.000000e+00 : f32
    %6 = vector.broadcast %cst_2 : f32 to vector<8x1xf32>
    %7 = arith.divf %6, %5 : vector<8x1xf32>
    %8 = vector.broadcast %2 : vector<8x1xf32> to vector<8x256xf32>
    %9 = arith.subf %0, %8 : vector<8x256xf32>
    %10 = vector.broadcast %7 : vector<8x1xf32> to vector<8x256xf32>
    %11 = arith.mulf %9, %10 : vector<8x256xf32>
    %c0_3 = arith.constant 0 : index
    %c0_4 = arith.constant 0 : index
    %12 = vector.load %arg2[%c0_3, %c0_4] : memref<8x256xf32, #tpu.memory_space<vmem>>, vector<8x256xf32>
    tpu.vector_store %arg2[%c0_3, %c0_4], %11 {strides = array<i32>} : memref<8x256xf32, #tpu.memory_space<vmem>>, vector<8x256xf32>,
    return
  }
  func.func @transform_0(%arg0: i32) -> (i32, i32) {
    %c0_i32 = arith.constant 0 : i32
    %c0_i32_0 = arith.constant 0 : i32
    return %arg0, %c0_i32 : i32, i32
  }
  func.func @transform_1(%arg0: i32) -> (i32, i32) {
    %c0_i32 = arith.constant 0 : i32
    %c0_i32_0 = arith.constant 0 : i32
    return %arg0, %c0_i32 : i32, i32
  }
}

</mosaic_0001>

<llo_original>
// kernel: tpu_custom_call.1
$region0: #{tpu_custom_call.1}
  #allocation0 [shape = 'u32[]', space=smem, size = 0x4, offset = 0x4, fixed_abs, tag = 'smem constant byte address 0x4 - core index']
  #allocation1 [shape = 'u32[72,128]{1,0:T(1,128)}', space=vmem, size = 0x9000, scoped, tag = 'internal scratch']
  %s0 = inlined_call_operand.hbm [shape: f32[8,256], index: 0, kind: input, shape index: {}]
  %s1 = inlined_call_operand.hbm [shape: f32[8,256], index: 1, kind: output, shape index: {}]
  %s2 = sld [smem:[#allocation0]]
  $region18: #{tpu_custom_call.1} parent=0
    _
  %s4 = ssub.s32 1, %s2
  %s5 = scalar_select 0, %s4, %s2
  $region1: #{tpu_custom_call.1} parent=0
    #allocation2 [shape = 'u8[8192]{0}', space=vmem, size = 0x2000, scoped, tag = 'input window, operand 0, single buffered']
    #allocation3 [shape = 's32[1]{0}', space=sflag, size = 0x4, scoped, tag = 'scoped memory for tpu_custom_call.1']
    #allocation4 [shape = 's32[1]{0}', space=sflag, size = 0x4, scoped, tag = 'scoped memory for tpu_custom_call.1']
    #allocation5 [shape = 'u8[8192]{0}', space=vmem, size = 0x2000, scoped, tag = 'output window, operand 0, single buffered']
    %6 = vsyncpa [#allocation3], 0
    %7 = vsyncpa [#allocation4], 0
    // Predicated region
    $region2: #{tpu_custom_call.1} parent=1 // pred_check
      _
    $region3: #{tpu_custom_call.1} parent=1 // pred_check_branch
      %9 = sbr.rel (0) target = $region5
    $region4: #{tpu_custom_call.1} parent=1 // pred_region
      %11 = vsyncadd [#allocation3], 0
      %s13 = sshll.u32 %s0, 4
      %s14 = int_to_ptr.hbm [resolvable:$true] %s13
      %s15 = sshll.u32 [#allocation2], 4
      %s16 = int_to_ptr.vmem [resolvable:$true] %s15
      %18 = dma.hbm_to_vmem [thread:$0]  %s14, 256, %s16, [#allocation3]
    $region5: #{tpu_custom_call.1} parent=1 // pred_fallthru
      _
    // Predicated region
    $region6: #{tpu_custom_call.1} parent=1 // pred_check
      _
    $region7: #{tpu_custom_call.1} parent=1 // pred_check_branch
      %20 = sbr.rel (0) target = $region9
    $region8: #{tpu_custom_call.1} parent=1 // pred_region
      %22 = dma.done [#allocation3], 256
    $region9: #{tpu_custom_call.1} parent=1 // pred_fallthru
      _
    %v23 = vld [vmem:[#allocation2] sm:$0xff]
    %v24 = vld [vmem:[#allocation2 + $0x8] sm:$0xff]
    %v25 = vmin.f32 %v23, %v24
    %26 = vmin.xlane.f32.xlu0 %v25
    %v27 = vpop.xlane.xlu0 %26
    %v28 = vmax.f32 %v23, %v24
    %29 = vmax.xlane.f32.xlu0 %v28
    %v30 = vpop.xlane.xlu0 %29
    %v31 = vsub.f32 %v30, %v27
    %v32 = vrcp.pop %v31
    %v33 = vmul.f32 %v31, %v32
    %v34 = vsub.f32 1.0, %v33
    %v35 = vmul.f32 %v32, %v34
    %v36 = vadd.f32 %v32, %v35
    %vm37 = vweird.f32 %v31
    %vm38 = vweird.f32 %v32
    %vm39 = vmor %vm37, %vm38
    %v40 = vsel %vm39, %v32, %v36
    %v41 = vand.u32 2147483647, %v31
    %vm42 = vcmp.eq.f32.partialorder %v41, 8.507059e+37
    %v43 = vand.u32 %v31, 2147483648
    %v44 = vor.u32 1.1754944e-38, %v43
    %v45 = vsel %vm42, %v44, %v40
    %v46 = vmul.f32 1.0, %v45
    %v47 = vsub.f32 %v23, %v27
    %v48 = vsub.f32 %v24, %v27
    %v49 = vmul.f32 %v47, %v46
    %v50 = vmul.f32 %v48, %v46
    %51 = vst [vmem:[#allocation5] sm:$0xff] %v49
    %52 = vst [vmem:[#allocation5 + $0x8] sm:$0xff] %v50
    // Predicated region
    $region10: #{tpu_custom_call.1} parent=1 // pred_check
      _
    $region11: #{tpu_custom_call.1} parent=1 // pred_check_branch
      %54 = sbr.rel (0) target = $region13
    $region12: #{tpu_custom_call.1} parent=1 // pred_region
      %56 = vsyncadd [#allocation4], 0
      %s58 = sshll.u32 [#allocation5], 4
      %s59 = int_to_ptr.vmem [resolvable:$true] %s58
      %s60 = sshll.u32 %s1, 4
      %s61 = int_to_ptr.hbm [resolvable:$true] %s60
      %63 = dma.vmem_to_hbm [thread:$0]  %s59, 256, %s61, [#allocation4]
    $region13: #{tpu_custom_call.1} parent=1 // pred_fallthru
      _
    // Predicated region
    $region14: #{tpu_custom_call.1} parent=1 // pred_check
      _
    $region15: #{tpu_custom_call.1} parent=1 // pred_check_branch
      %65 = sbr.rel (0) target = $region17
    $region16: #{tpu_custom_call.1} parent=1 // pred_region
      %67 = dma.done [#allocation4], 256
    $region17: #{tpu_custom_call.1} parent=1 // pred_fallthru
      _
    %68 = vsyncpa [#allocation3], 1
    %69 = vsyncpa [#allocation4], 1

</llo_original>
